<compile_context>
chip_gen: v5e
topology: v5e:2x2
jax: 0.10.0
libtpu: 0.0.40
codegen_flags: <defaults>
</compile_context>

<pallas_src>
import functools

import jax
import jax.numpy as jnp
from jax import lax
from jax.experimental import pallas as pl
from jax.experimental.pallas import tpu as pltpu


def _conv_bn_relu_kernel(x_ref, w_ref, b_ref, o_ref, *, kh, wpa, ow, g_sub, n_sub):
    """One (batch, row-tile) grid step.

    x_ref: ((g + kh - 1) * WPA, KW*C)  packed, halo'd input rows for this tile
    w_ref: (KH, KW*C, OCP)             BN-scale-folded weights, OC padded to OCP
    b_ref: (1, OCP)                    folded bias (beta + (conv_bias - mean)*scale)
    o_ref: (g, OW, OCP)                output rows for this tile
    """
    ocp = o_ref.shape[-1]
    m_sub = g_sub * wpa
    bias = b_ref[...]                               # hoisted broadcast

    def body(s, carry):
        base = pl.multiple_of(s * m_sub, 8)         # WPA and m_sub are %8 == 0
        # First tap initialises the accumulator (no zero-fill + add pass).
        acc = jnp.dot(x_ref[pl.ds(base, m_sub), :], w_ref[0],
                      preferred_element_type=jnp.float32)
        for ki in range(1, kh):
            off = pl.multiple_of(base + ki * wpa, 8)
            acc = acc + jnp.dot(x_ref[pl.ds(off, m_sub), :], w_ref[ki],
                                preferred_element_type=jnp.float32)
        y = jnp.maximum(acc + bias, 0.0)            # bias + ReLU epilogue
        # Drop the WPA-OW garbage columns at store time; lanes (OCP) stay dense.
        y = y.reshape(g_sub, wpa, ocp)[:, :ow, :]
        o_ref[pl.ds(s * g_sub, g_sub), :, :] = y.astype(o_ref.dtype)
        return carry

    lax.fori_loop(0, n_sub, body, 0, unroll=n_sub <= 4)


def _vmem_capacity_bytes():
    try:
        return int(pltpu.get_tpu_info().vmem_capacity_bytes)
    except Exception:
        return 64 * 1024 * 1024          # conservative (v7x per-core) fallback


def _largest_divisor(n, fits):
    for d in range(n, 0, -1):
        if n % d == 0 and fits(d):
            return d
    return 1


@functools.partial(jax.jit, static_argnames=("stride", "padding", "use_bf16"))
def conv_block_forward(x_nchw, weight, conv_bias, gamma, beta,
                       running_mean, running_var, *, stride, padding,
                       use_bf16=False):
    eps = 1e-5
    oc, c, kh, kw = weight.shape
    n, _, h, w = x_nchw.shape

    inv_std = lax.rsqrt(running_var + eps)
    scale = gamma * inv_std                                  # (OC,)
    bias = beta + (conv_bias - running_mean) * scale         # (OC,)

    if stride != 1:
        # TODO(synk): strided convs use the XLA conv + folded BN/ReLU fallback;
        # the fused Pallas path relies on the stride-1 contiguous-window trick.
        y = lax.conv_general_dilated(
            x_nchw, weight, (stride, stride),
            [(padding, padding), (padding, padding)],
            dimension_numbers=("NCHW", "OIHW", "NCHW"))
        y = y * scale[None, :, None, None] + bias[None, :, None, None]
        return jnp.maximum(y, 0.0)

    hp = h + 2 * padding                       # padded height = OH + KH - 1
    wp = w + 2 * padding                       # padded width
    oh = hp - kh + 1
    ow = wp - kw + 1
    wpa = ((wp + 7) // 8) * 8                  # sublane-aligned row width
    kwc = kw * c                               # packed contraction dim
    ocp = ((oc + 127) // 128) * 128            # lane-dense output channels

    # ---- pack the KW taps into the channel (contraction) axis ---------------
    # xpk[b, r, j, kj*C + c] = x_padded_nhwc[b, r, j + kj, c]
    x_nhwc = jnp.transpose(x_nchw, (0, 2, 3, 1))
    xp = jnp.pad(x_nhwc, ((0, 0), (padding, padding),
                          (padding, padding + (wpa - wp) + kw - 1), (0, 0)))
    xpk = jnp.concatenate([xp[:, :, kj:kj + wpa, :] for kj in range(kw)],
                          axis=-1)                           # (N, HP, WPA, KW*C)

    # ---- generation-aware tile sizes -----------------------------------------
    cap = _vmem_capacity_bytes()
    out_budget = cap // 32                     # ~2 MiB (v7x) / ~4 MiB (v5e/v6e)
    in_budget = cap // 16
    g = _largest_divisor(
        oh, lambda d: (d * ow * ocp * 4 <= out_budget and
                       (d + kh - 1) * wpa * kwc * 4 <= in_budget))
    t_tiles = oh // g
    gh = g + kh - 1                            # input rows per tile (with halo)
    # Inner chunk: keep the live f32 accumulator <= ~128 KiB (~32 vregs).
    g_sub = _largest_divisor(g, lambda d: d * wpa * ocp * 4 <= 128 * 1024)
    n_sub = g // g_sub
    # Tap windows must stay inside the halo'd tile (VMEM reads are unchecked).
    assert ((n_sub - 1) * g_sub + (kh - 1) + g_sub) * wpa <= gh * wpa

    # ---- halo'd row tiles: VMEM scales with the tile, not the image ----------
    x_tiles = jnp.stack([xpk[:, t * g:t * g + gh] for t in range(t_tiles)],
                        axis=1)                              # (N, T, GH, WPA, KW*C)
    x_tiles = x_tiles.reshape(n, t_tiles, gh * wpa, kwc)

    # ---- fold BN scale into weights, pack to (KH, KW*C, OCP) -----------------
    w_taps = (jnp.transpose(weight, (2, 3, 1, 0)) * scale).reshape(kh, kwc, oc)
    w_taps = jnp.pad(w_taps, ((0, 0), (0, 0), (0, ocp - oc)))
    bias_p = jnp.pad(bias, (0, ocp - oc)).reshape(1, ocp)

    if use_bf16:
        # Optional half-HBM-read path (v6e/v7x); accumulate stays f32.
        x_tiles = x_tiles.astype(jnp.bfloat16)
        w_taps = w_taps.astype(jnp.bfloat16)

    # ---- explicit VMEM working-set estimate -----------------------------------
    itemsize = 2 if use_bf16 else 4
    vmem_est = (2 * gh * wpa * kwc * itemsize            # double-buffered input tile
                + 2 * kh * kwc * ocp * itemsize          # weights (2 bufs)
                + 2 * ocp * 4                            # bias
                + 2 * g * ow * ocp * 4                   # double-buffered output tile
                + 2 * g_sub * wpa * (ocp + kwc) * 4)     # accumulator + operand temps
    vmem_limit = int(min(cap * 3 // 4, max(32 * 1024 * 1024, 2 * vmem_est)))

    kern = functools.partial(_conv_bn_relu_kernel, kh=kh, wpa=wpa, ow=ow,
                             g_sub=g_sub, n_sub=n_sub)

    out = pl.pallas_call(
        kern,
        out_shape=jax.ShapeDtypeStruct((n, oh, ow, ocp), x_nchw.dtype),
        grid_spec=pltpu.PrefetchScalarGridSpec(
            num_scalar_prefetch=0,
            grid=(n, t_tiles),
            in_specs=[
                pl.BlockSpec((None, None, gh * wpa, kwc),
                             lambda i, t: (i, t, 0, 0)),
                pl.BlockSpec((kh, kwc, ocp), lambda i, t: (0, 0, 0)),
                pl.BlockSpec((1, ocp), lambda i, t: (0, 0)),
            ],
            out_specs=pl.BlockSpec((None, g, ow, ocp),
                                   lambda i, t: (i, t, 0, 0)),
        ),
        compiler_params=pltpu.CompilerParams(
            # Halo row-tiles make every (batch, row-tile) step independent, so
            # both axes shard across TensorCores without duplicating a shared
            # resident image (addresses the v7x residency concern).
            dimension_semantics=("parallel", "parallel"),
            vmem_limit_bytes=vmem_limit),
    )(x_tiles, w_taps, bias_p)

    # Drop padded OC lanes, back to NCHW.
    return jnp.transpose(out[..., :oc], (0, 3, 1, 2))


def _reference(x_nchw, weight, conv_bias, gamma, beta,
               running_mean, running_var, stride, padding):
    eps = 1e-5
    y = lax.conv_general_dilated(
        x_nchw, weight, (stride, stride),
        [(padding, padding), (padding, padding)],
        dimension_numbers=("NCHW", "OIHW", "NCHW"))
    y = y + conv_bias[None, :, None, None]
    y = (y - running_mean[None, :, None, None]) / jnp.sqrt(
        running_var[None, :, None, None] + eps)
    y = y * gamma[None, :, None, None] + beta[None, :, None, None]
    return jnp.maximum(y, 0.0)


if __name__ == "__main__":
    # ConvBlock(in_channels=4, out_channels=8, kernel_size=3, stride=1, padding=1)
    N, C, H, W = 2, 4, 16, 16
    OC, KH, KW = 8, 3, 3
    stride, padding = 1, 1

    key = jax.random.PRNGKey(0)
    k_x, k_w, k_b, k_g, k_be, k_rm, k_rv = jax.random.split(key, 7)

    x = jax.random.normal(k_x, (N, C, H, W), dtype=jnp.float32)
    weight = jax.random.normal(k_w, (OC, C, KH, KW), dtype=jnp.float32) * 0.1
    conv_bias = jax.random.normal(k_b, (OC,), dtype=jnp.float32) * 0.1
    gamma = jax.random.uniform(k_g, (OC,), minval=0.5, maxval=1.5, dtype=jnp.float32)
    beta = jax.random.normal(k_be, (OC,), dtype=jnp.float32) * 0.1
    running_mean = jax.random.normal(k_rm, (OC,), dtype=jnp.float32) * 0.1
    running_var = jax.random.uniform(k_rv, (OC,), minval=0.5, maxval=1.5,
                                     dtype=jnp.float32)

    out = conv_block_forward(x, weight, conv_bias, gamma, beta,
                             running_mean, running_var,
                             stride=stride, padding=padding)
    out = jax.block_until_ready(out)

    ref = _reference(x, weight, conv_bias, gamma, beta,
                     running_mean, running_var, stride, padding)
    assert out.shape == (N, OC, H, W)
    assert jnp.allclose(out, ref, atol=1e-4, rtol=1e-4)

    print("KERNEL_OK")
</pallas_src>

<mosaic_0001>
module attributes {stable_mosaic.version = 11 : i64} {
  func.func @_conv_bn_relu_kernel(%arg0: i32, %arg1: i32, %arg2: memref<1x1x432x12xf32, #tpu.memory_space<vmem>>, %arg3: memref<3x12x128xf32, #tpu.memory_space<vmem>>, %arg4: memref<1x128xf32, #tpu.memory_space<vmem>>, %arg5: memref<1x16x16x128xf32, #tpu.memory_space<vmem>>) attributes {dimension_semantics = [#tpu.dimension_semantics<parallel>, #tpu.dimension_semantics<parallel>], iteration_bounds = array<i64: 2, 1>, scalar_prefetch = 0 : i64, scratch_operands = 0 : i64, tpu.core_type = #tpu.core_type<tc>, window_params = [{transform_indices = @transform_0, window_bounds = array<i64: 1, 1, 432, 12>}, {pipeline_mode = #tpu.pipeline_mode<synchronous>, transform_indices = @transform_1, window_bounds = array<i64: 3, 12, 128>}, {pipeline_mode = #tpu.pipeline_mode<synchronous>, transform_indices = @transform_2, window_bounds = array<i64: 1, 128>}, {transform_indices = @transform_3, window_bounds = array<i64: 1, 16, 16, 128>}]} {
    %c0 = arith.constant 0 : index
    %c0_0 = arith.constant 0 : index
    %0 = vector.load %arg4[%c0, %c0_0] : memref<1x128xf32, #tpu.memory_space<vmem>>, vector<1x128xf32>
    %c0_i32 = arith.constant 0 : i32
    %c192_i32 = arith.constant 192 : i32
    %1 = arith.muli %c0_i32, %c192_i32 : i32
    %2 = tpu.assume_multiple %1, 8 : i32
    %c0_1 = arith.constant 0 : index
    %c0_2 = arith.constant 0 : index
    %3 = arith.index_cast %2 : i32 to index
    %c0_3 = arith.constant 0 : index
    %4 = vector.load %arg2[%c0_1, %c0_2, %3, %c0_3] : memref<1x1x432x12xf32, #tpu.memory_space<vmem>>, vector<1x1x192x12xf32>
    %5 = vector.shape_cast %4 : vector<1x1x192x12xf32> to vector<192x12xf32>
    %c0_4 = arith.constant 0 : index
    %c0_5 = arith.constant 0 : index
    %c0_6 = arith.constant 0 : index
    %6 = vector.load %arg3[%c0_4, %c0_5, %c0_6] : memref<3x12x128xf32, #tpu.memory_space<vmem>>, vector<1x12x128xf32>
    %7 = vector.shape_cast %6 : vector<1x12x128xf32> to vector<12x128xf32>
    %cst = arith.constant dense<0.000000e+00> : vector<192x128xf32>
    %8 = tpu.matmul %5, %7, %cst {dimension_numbers = #tpu.dot_dimension_numbers<[1], [0], [0], [1], [0, 0, 1, 1], [], []>} : vector<192x12xf32>, vector<12x128xf32>, vector<192x128xf32> -> vector<192x128xf32>
    %c24_i32 = arith.constant 24 : i32
    %9 = arith.addi %2, %c24_i32 : i32
    %10 = tpu.assume_multiple %9, 8 : i32
    %c0_7 = arith.constant 0 : index
    %c0_8 = arith.constant 0 : index
    %11 = arith.index_cast %10 : i32 to index
    %c0_9 = arith.constant 0 : index
    %12 = vector.load %arg2[%c0_7, %c0_8, %11, %c0_9] : memref<1x1x432x12xf32, #tpu.memory_space<vmem>>, vector<1x1x192x12xf32>
    %13 = vector.shape_cast %12 : vector<1x1x192x12xf32> to vector<192x12xf32>
    %c1 = arith.constant 1 : index
    %c0_10 = arith.constant 0 : index
    %c0_11 = arith.constant 0 : index
    %14 = vector.load %arg3[%c1, %c0_10, %c0_11] : memref<3x12x128xf32, #tpu.memory_space<vmem>>, vector<1x12x128xf32>
    %15 = vector.shape_cast %14 : vector<1x12x128xf32> to vector<12x128xf32>
    %cst_12 = arith.constant dense<0.000000e+00> : vector<192x128xf32>
    %16 = tpu.matmul %13, %15, %cst_12 {dimension_numbers = #tpu.dot_dimension_numbers<[1], [0], [0], [1], [0, 0, 1, 1], [], []>} : vector<192x12xf32>, vector<12x128xf32>, vector<192x128xf32> -> vector<192x128xf32>
    %17 = arith.addf %8, %16 : vector<192x128xf32>
    %c48_i32 = arith.constant 48 : i32
    %18 = arith.addi %2, %c48_i32 : i32
    %19 = tpu.assume_multiple %18, 8 : i32
    %c0_13 = arith.constant 0 : index
    %c0_14 = arith.constant 0 : index
    %20 = arith.index_cast %19 : i32 to index
    %c0_15 = arith.constant 0 : index
    %21 = vector.load %arg2[%c0_13, %c0_14, %20, %c0_15] : memref<1x1x432x12xf32, #tpu.memory_space<vmem>>, vector<1x1x192x12xf32>
    %22 = vector.shape_cast %21 : vector<1x1x192x12xf32> to vector<192x12xf32>
    %c2 = arith.constant 2 : index
    %c0_16 = arith.constant 0 : index
    %c0_17 = arith.constant 0 : index
    %23 = vector.load %arg3[%c2, %c0_16, %c0_17] : memref<3x12x128xf32, #tpu.memory_space<vmem>>, vector<1x12x128xf32>
    %24 = vector.shape_cast %23 : vector<1x12x128xf32> to vector<12x128xf32>
    %cst_18 = arith.constant dense<0.000000e+00> : vector<192x128xf32>
    %25 = tpu.matmul %22, %24, %cst_18 {dimension_numbers = #tpu.dot_dimension_numbers<[1], [0], [0], [1], [0, 0, 1, 1], [], []>} : vector<192x12xf32>, vector<12x128xf32>, vector<192x128xf32> -> vector<192x128xf32>
    %26 = arith.addf %17, %25 : vector<192x128xf32>
    %27 = vector.broadcast %0 : vector<1x128xf32> to vector<192x128xf32>
    %28 = arith.addf %26, %27 : vector<192x128xf32>
    %cst_19 = arith.constant 0.000000e+00 : f32
    %29 = vector.broadcast %cst_19 : f32 to vector<192x128xf32>
    %30 = arith.maximumf %28, %29 : vector<192x128xf32>
    %31 = vector.shape_cast %30 : vector<192x128xf32> to vector<8x24x128xf32>
    %32 = vector.extract_strided_slice %31 {offsets = [0, 0, 0], sizes = [8, 16, 128], strides = [1, 1, 1]} : vector<8x24x128xf32> to vector<8x16x128xf32>
    %c8_i32 = arith.constant 8 : i32
    %33 = arith.muli %c0_i32, %c8_i32 : i32
    %c0_20 = arith.constant 0 : index
    %34 = arith.index_cast %33 : i32 to index
    %c0_21 = arith.constant 0 : index
    %c0_22 = arith.constant 0 : index
    %35 = vector.load %arg5[%c0_20, %34, %c0_21, %c0_22] : memref<1x16x16x128xf32, #tpu.memory_space<vmem>>, vector<1x8x16x128xf32>
    %36 = vector.shape_cast %35 : vector<1x8x16x128xf32> to vector<8x16x128xf32>
    %37 = vector.shape_cast %32 : vector<8x16x128xf32> to vector<1x8x16x128xf32>
    tpu.vector_store %arg5[%c0_20, %34, %c0_21, %c0_22], %37 {strides = array<i32>} : memref<1x16x16x128xf32, #tpu.memory_space<vmem>>, vector<1x8x16x128xf32>,
    %c1_i32 = arith.constant 1 : i32
    %c192_i32_23 = arith.constant 192 : i32
    %38 = arith.muli %c1_i32, %c192_i32_23 : i32
    %39 = tpu.assume_multiple %38, 8 : i32
    %c0_24 = arith.constant 0 : index
    %c0_25 = arith.constant 0 : index
    %40 = arith.index_cast %39 : i32 to index
    %c0_26 = arith.constant 0 : index
    %41 = vector.load %arg2[%c0_24, %c0_25, %40, %c0_26] : memref<1x1x432x12xf32, #tpu.memory_space<vmem>>, vector<1x1x192x12xf32>
    %42 = vector.shape_cast %41 : vector<1x1x192x12xf32> to vector<192x12xf32>
    %c0_27 = arith.constant 0 : index
    %c0_28 = arith.constant 0 : index
    %c0_29 = arith.constant 0 : index
    %43 = vector.load %arg3[%c0_27, %c0_28, %c0_29] : memref<3x12x128xf32, #tpu.memory_space<vmem>>, vector<1x12x128xf32>
    %44 = vector.shape_cast %43 : vector<1x12x128xf32> to vector<12x128xf32>
    %cst_30 = arith.constant dense<0.000000e+00> : vector<192x128xf32>
    %45 = tpu.matmul %42, %44, %cst_30 {dimension_numbers = #tpu.dot_dimension_numbers<[1], [0], [0], [1], [0, 0, 1, 1], [], []>} : vector<192x12xf32>, vector<12x128xf32>, vector<192x128xf32> -> vector<192x128xf32>
    %c24_i32_31 = arith.constant 24 : i32
    %46 = arith.addi %39, %c24_i32_31 : i32
    %47 = tpu.assume_multiple %46, 8 : i32
    %c0_32 = arith.constant 0 : index
    %c0_33 = arith.constant 0 : index
    %48 = arith.index_cast %47 : i32 to index
    %c0_34 = arith.constant 0 : index
    %49 = vector.load %arg2[%c0_32, %c0_33, %48, %c0_34] : memref<1x1x432x12xf32, #tpu.memory_space<vmem>>, vector<1x1x192x12xf32>
    %50 = vector.shape_cast %49 : vector<1x1x192x12xf32> to vector<192x12xf32>
    %c1_35 = arith.constant 1 : index
    %c0_36 = arith.constant 0 : index
    %c0_37 = arith.constant 0 : index
    %51 = vector.load %arg3[%c1_35, %c0_36, %c0_37] : memref<3x12x128xf32, #tpu.memory_space<vmem>>, vector<1x12x128xf32>
    %52 = vector.shape_cast %51 : vector<1x12x128xf32> to vector<12x128xf32>
    %cst_38 = arith.constant dense<0.000000e+00> : vector<192x128xf32>
    %53 = tpu.matmul %50, %52, %cst_38 {dimension_numbers = #tpu.dot_dimension_numbers<[1], [0], [0], [1], [0, 0, 1, 1], [], []>} : vector<192x12xf32>, vector<12x128xf32>, vector<192x128xf32> -> vector<192x128xf32>
    %54 = arith.addf %45, %53 : vector<192x128xf32>
    %c48_i32_39 = arith.constant 48 : i32
    %55 = arith.addi %39, %c48_i32_39 : i32
    %56 = tpu.assume_multiple %55, 8 : i32
    %c0_40 = arith.constant 0 : index
    %c0_41 = arith.constant 0 : index
    %57 = arith.index_cast %56 : i32 to index
    %c0_42 = arith.constant 0 : index
    %58 = vector.load %arg2[%c0_40, %c0_41, %57, %c0_42] : memref<1x1x432x12xf32, #tpu.memory_space<vmem>>, vector<1x1x192x12xf32>
    %59 = vector.shape_cast %58 : vector<1x1x192x12xf32> to vector<192x12xf32>
    %c2_43 = arith.constant 2 : index
    %c0_44 = arith.constant 0 : index
    %c0_45 = arith.constant 0 : index
    %60 = vector.load %arg3[%c2_43, %c0_44, %c0_45] : memref<3x12x128xf32, #tpu.memory_space<vmem>>, vector<1x12x128xf32>
    %61 = vector.shape_cast %60 : vector<1x12x128xf32> to vector<12x128xf32>
    %cst_46 = arith.constant dense<0.000000e+00> : vector<192x128xf32>
    %62 = tpu.matmul %59, %61, %cst_46 {dimension_numbers = #tpu.dot_dimension_numbers<[1], [0], [0], [1], [0, 0, 1, 1], [], []>} : vector<192x12xf32>, vector<12x128xf32>, vector<192x128xf32> -> vector<192x128xf32>
    %63 = arith.addf %54, %62 : vector<192x128xf32>
    %64 = vector.broadcast %0 : vector<1x128xf32> to vector<192x128xf32>
    %65 = arith.addf %63, %64 : vector<192x128xf32>
    %cst_47 = arith.constant 0.000000e+00 : f32
    %66 = vector.broadcast %cst_47 : f32 to vector<192x128xf32>
    %67 = arith.maximumf %65, %66 : vector<192x128xf32>
    %68 = vector.shape_cast %67 : vector<192x128xf32> to vector<8x24x128xf32>
    %69 = vector.extract_strided_slice %68 {offsets = [0, 0, 0], sizes = [8, 16, 128], strides = [1, 1, 1]} : vector<8x24x128xf32> to vector<8x16x128xf32>
    %c8_i32_48 = arith.constant 8 : i32
    %70 = arith.muli %c1_i32, %c8_i32_48 : i32
    %c0_49 = arith.constant 0 : index
    %71 = arith.index_cast %70 : i32 to index
    %c0_50 = arith.constant 0 : index
    %c0_51 = arith.constant 0 : index
    %72 = vector.load %arg5[%c0_49, %71, %c0_50, %c0_51] : memref<1x16x16x128xf32, #tpu.memory_space<vmem>>, vector<1x8x16x128xf32>
    %73 = vector.shape_cast %72 : vector<1x8x16x128xf32> to vector<8x16x128xf32>
    %74 = vector.shape_cast %69 : vector<8x16x128xf32> to vector<1x8x16x128xf32>
    tpu.vector_store %arg5[%c0_49, %71, %c0_50, %c0_51], %74 {strides = array<i32>} : memref<1x16x16x128xf32, #tpu.memory_space<vmem>>, vector<1x8x16x128xf32>,
    %c2_i32 = arith.constant 2 : i32
    return
  }
  func.func @transform_0(%arg0: i32, %arg1: i32) -> (i32, i32, i32, i32) {
    %c0_i32 = arith.constant 0 : i32
    %c0_i32_0 = arith.constant 0 : i32
    %c0_i32_1 = arith.constant 0 : i32
    return %arg0, %arg1, %c0_i32, %c0_i32_0 : i32, i32, i32, i32
  }
  func.func @transform_1(%arg0: i32, %arg1: i32) -> (i32, i32, i32) {
    %c0_i32 = arith.constant 0 : i32
    %c0_i32_0 = arith.constant 0 : i32
    %c0_i32_1 = arith.constant 0 : i32
    %c0_i32_2 = arith.constant 0 : i32
    return %c0_i32, %c0_i32_0, %c0_i32_1 : i32, i32, i32
  }
  func.func @transform_2(%arg0: i32, %arg1: i32) -> (i32, i32) {
    %c0_i32 = arith.constant 0 : i32
    %c0_i32_0 = arith.constant 0 : i32
    %c0_i32_1 = arith.constant 0 : i32
    return %c0_i32, %c0_i32_0 : i32, i32
  }
  func.func @transform_3(%arg0: i32, %arg1: i32) -> (i32, i32, i32, i32) {
    %c0_i32 = arith.constant 0 : i32
    %c0_i32_0 = arith.constant 0 : i32
    %c0_i32_1 = arith.constant 0 : i32
    return %arg0, %arg1, %c0_i32, %c0_i32_0 : i32, i32, i32, i32
  }
}

</mosaic_0001>

<llo_original>
// kernel: conv_block_forward.1
$region0: #{conv_block_forward.1}
  #allocation0 [shape = 'u32[]', space=smem, size = 0x4, offset = 0x4, fixed_abs, tag = 'smem constant byte address 0x4 - core index']
  #allocation1 [shape = 'u32[72,128]{1,0:T(1,128)}', space=vmem, size = 0x9000, scoped, tag = 'internal scratch']
  %s0 = inlined_call_operand.vmem [shape: f32[2,1,432,12], index: 0, kind: input, shape index: {}]
  %s1 = inlined_call_operand.vmem [shape: f32[3,12,128], index: 1, kind: input, shape index: {}]
  %s2 = inlined_call_operand.vmem [shape: f32[1,128], index: 2, kind: input, shape index: {}]
  %s3 = inlined_call_operand.vmem [shape: f32[2,16,16,128], index: 3, kind: output, shape index: {}]
  %s4 = sld [smem:[#allocation0]]
  $region45: #{conv_block_forward.1} parent=0
    _
  %s6 = ssub.s32 1, %s4
  %s7 = scalar_select 0, %s6, %s4
  loop: start=0, step=1, limit=4
  $region2: #{conv_block_forward.1} parent=0 // loop_pre_header
    _
  $region3: #{conv_block_forward.1} parent=0 // loop_header
    %s9 = sphi 0, %s13
    %p10 = scmp.ge.s32.totalorder %s9, 4
    %s16 = sphi 0, %s28
    %s17 = sphi 0, %s24
    %s18 = sphi 0, %s16
    %s19 = sphi 0, %s17
    %s20 = sphi 0, %s18
    %s21 = sphi 0, %s19
    %s33 = sphi 0, %s35
    %s36 = sphi 0, %s33
    %s37 = sphi 0, %s36
    %s53 = sphi 0, %s37
    %s57 = sphi 0, %s57
    %s59 = sphi 0, %s57
    %s60 = sphi 0, %s59
    %s74 = sphi 0, %s60
    %s78 = sphi 0, %s78
    %s80 = sphi 0, %s78
    %s81 = sphi 0, %s80
    %s95 = sphi 0, %s81
    %s103 = sphi 0, %s105
    %s106 = sphi 0, %s103
    %s107 = sphi 0, %s106
    %s123 = sphi 0, %s107
  $region4: #{conv_block_forward.1} parent=0 // loop_header_branch
    %12 = sbr.rel (%p10) target = $region8
  $region5: #{conv_block_forward.1} parent=0 // loop_body
    %s14 = ssub.s32 %s9, 1
    %s15 = ssub.s32 %s9, 2
    %s22 = sadd.s32 1, %s17
    %p23 = scmp.ge.s32.totalorder %s22, 1
    %s24 = scalar_select %p23, 0, %s22
    %s25 = sadd.s32 1, %s16
    %s26 = scalar_select %p23, %s25, %s16
    %p27 = scmp.ge.s32.totalorder %s26, 2
    %s28 = scalar_select %p27, 0, %s26
    %s29 = ssub.s32 %s16, %s28
    %s30 = ssub.s32 %s17, %s24
    %s31 = sor.u32 %s29, %s30
    %p32 = scmp.eq.s32.totalorder %s31, 0
    %s34 = sadd.s32 %s33, 1
    %s35 = scalar_select %p32, %s33, %s34
    %p38 = pneg %p32
    %p39 = scmp.eq.s32.totalorder %s9, 1
    %p40 = por %p38, %p39
    %p41 = scmp.ne.s32.totalorder %s33, %s36
    %p42 = scmp.eq.s32.totalorder %s9, 0
    %p43 = por %p41, %p42
    %p44 = scmp.ne.s32.totalorder %s33, %s36
    %p45 = scmp.eq.s32.totalorder %s14, 1
    %p46 = por %p44, %p45
    %p47 = scmp.ne.s32.totalorder %s36, %s37
    %p48 = scmp.eq.s32.totalorder %s14, 0
    %p49 = por %p47, %p48
    %p50 = scmp.ne.s32.totalorder %s36, %s37
    %p51 = scmp.eq.s32.totalorder %s15, 1
    %p52 = por %p50, %p51
    %p54 = scmp.ne.s32.totalorder %s37, %s53
    %p55 = scmp.eq.s32.totalorder %s15, 0
    %p56 = por %p54, %p55
    %s58 = sadd.s32 %s57, 1
    %p61 = scmp.eq.s32.totalorder %s9, 1
    %p62 = scmp.ne.s32.totalorder %s57, %s59
    %p63 = scmp.eq.s32.totalorder %s9, 0
    %p64 = por %p62, %p63
    %p65 = scmp.ne.s32.totalorder %s57, %s59
    %p66 = scmp.eq.s32.totalorder %s14, 1
    %p67 = por %p65, %p66
    %p68 = scmp.ne.s32.totalorder %s59, %s60
    %p69 = scmp.eq.s32.totalorder %s14, 0
    %p70 = por %p68, %p69
    %p71 = scmp.ne.s32.totalorder %s59, %s60
    %p72 = scmp.eq.s32.totalorder %s15, 1
    %p73 = por %p71, %p72
    %p75 = scmp.ne.s32.totalorder %s60, %s74
    %p76 = scmp.eq.s32.totalorder %s15, 0
    %p77 = por %p75, %p76
    %s79 = sadd.s32 %s78, 1
    %p82 = scmp.eq.s32.totalorder %s9, 1
    %p83 = scmp.ne.s32.totalorder %s78, %s80
    %p84 = scmp.eq.s32.totalorder %s9, 0
    %p85 = por %p83, %p84
    %p86 = scmp.ne.s32.totalorder %s78, %s80
    %p87 = scmp.eq.s32.totalorder %s14, 1
    %p88 = por %p86, %p87
    %p89 = scmp.ne.s32.totalorder %s80, %s81
    %p90 = scmp.eq.s32.totalorder %s14, 0
    %p91 = por %p89, %p90
    %p92 = scmp.ne.s32.totalorder %s80, %s81
    %p93 = scmp.eq.s32.totalorder %s15, 1
    %p94 = por %p92, %p93
    %p96 = scmp.ne.s32.totalorder %s81, %s95
    %p97 = scmp.eq.s32.totalorder %s15, 0
    %p98 = por %p96, %p97
    %s99 = ssub.s32 %s16, %s28
    %s100 = ssub.s32 %s17, %s24
    %s101 = sor.u32 %s99, %s100
    %p102 = scmp.eq.s32.totalorder %s101, 0
    %s104 = sadd.s32 %s103, 1
    %s105 = scalar_select %p102, %s103, %s104
    %p108 = pneg %p102
    %p109 = scmp.eq.s32.totalorder %s9, 1
    %p110 = por %p108, %p109
    %p111 = scmp.ne.s32.totalorder %s103, %s106
    %p112 = scmp.eq.s32.totalorder %s9, 0
    %p113 = por %p111, %p112
    %p114 = scmp.ne.s32.totalorder %s103, %s106
    %p115 = scmp.eq.s32.totalorder %s14, 1
    %p116 = por %p114, %p115
    %p117 = scmp.ne.s32.totalorder %s106, %s107
    %p118 = scmp.eq.s32.totalorder %s14, 0
    %p119 = por %p117, %p118
    %p120 = scmp.ne.s32.totalorder %s106, %s107
    %p121 = scmp.eq.s32.totalorder %s15, 1
    %p122 = por %p120, %p121
    %p124 = scmp.ne.s32.totalorder %s107, %s123
    %p125 = scmp.eq.s32.totalorder %s15, 0
    %p126 = por %p124, %p125
    %p127 = scmp.le.s32.totalorder 1, %s9
    %p128 = scmp.lt.s32.totalorder %s9, 3
    %p129 = pnand %p127, %p128
    %p130 = pneg %p129
    // Predicated region
    $region9: #{conv_block_forward.1} parent=5 // pred_check
      _
    $region10: #{conv_block_forward.1} parent=5 // pred_check_branch
      %132 = sbr.rel (%p129) target = $region12
    $region11: #{conv_block_forward.1} parent=5 // pred_region
      %s133 = ssub.s32 %s9, 1
      // Predicated region
      $region13: #{conv_block_forward.1} parent=11 // pred_check
        %p134 = pneg %p70
      $region14: #{conv_block_forward.1} parent=11 // pred_check_branch
        %136 = sbr.rel (%p134) target = $region16
      $region15: #{conv_block_forward.1} parent=11 // pred_region
        _
      $region16: #{conv_block_forward.1} parent=11 // pred_fallthru
        _
      // Predicated region
      $region17: #{conv_block_forward.1} parent=11 // pred_check
        %p137 = pneg %p91
      $region18: #{conv_block_forward.1} parent=11 // pred_check_branch
        %139 = sbr.rel (%p137) target = $region20
      $region19: #{conv_block_forward.1} parent=11 // pred_region
        _
      $region20: #{conv_block_forward.1} parent=11 // pred_fallthru
        _
    $region12: #{conv_block_forward.1} parent=5 // pred_fallthru
      _
    %p140 = scmp.lt.s32.totalorder %s9, 2
    // Predicated region
    $region21: #{conv_block_forward.1} parent=5 // pred_check
      %p141 = pneg %p140
    $region22: #{conv_block_forward.1} parent=5 // pred_check_branch
      %143 = sbr.rel (%p141) target = $region24
    $region23: #{conv_block_forward.1} parent=5 // pred_region
      // Predicated region
      $region25: #{conv_block_forward.1} parent=23 // pred_check
        %p144 = pneg %p43
      $region26: #{conv_block_forward.1} parent=23 // pred_check_branch
        %146 = sbr.rel (%p144) target = $region28
      $region27: #{conv_block_forward.1} parent=23 // pred_region
        %p147 = scmp.lt.s32.totalorder %s16, 1
        %s148 = scalar_select %p147, %s16, 1
        %p149 = scmp.lt.s32.totalorder %s17, 0
        %s150 = scalar_select %p149, %s17, 0
        %s151 = smul.addr %s150, 54
        %s152 = smul.addr %s148, 54
        %s153 = sadd.s32 %s151, %s152
        %s154 = smul.addr %s153, 8
        %s155 = scalar_lea.vmem %s0, %s154
      $region28: #{conv_block_forward.1} parent=23 // pred_fallthru
        _
    $region24: #{conv_block_forward.1} parent=5 // pred_fallthru
      _
    %p156 = scmp.le.s32.totalorder 1, %s9
    %p157 = scmp.lt.s32.totalorder %s9, 3
    %p158 = pnand %p156, %p157
    %p159 = pneg %p158
    // Predicated region
    $region29: #{conv_block_forward.1} parent=5 // pred_check
      _
    $region30: #{conv_block_forward.1} parent=5 // pred_check_branch
      %161 = sbr.rel (%p158) target = $region32
    $region31: #{conv_block_forward.1} parent=5 // pred_region
      %s162 = ssub.s32 %s9, 1
      %p163 = scmp.lt.s32.totalorder %s18, 1
      %s164 = scalar_select %p163, %s18, 1
      %p165 = scmp.lt.s32.totalorder %s19, 0
      %s166 = scalar_select %p165, %s19, 0
      %s167 = smul.addr %s166, 54
      %s168 = smul.addr %s164, 54
      %s169 = sadd.s32 %s167, %s168
      %s170 = smul.addr %s169, 8
      %s171 = scalar_lea.vmem %s0, %s170
      %p172 = pneg %p49
      %p173 = pneg %p46
      %p174 = pneg %p70
      %p175 = pneg %p67
      %p176 = pneg %p91
      %p177 = pneg %p88
      %p178 = pneg %p119
      %p179 = pneg %p116
      %s180 = smul.u32 16, %s19
      %p181 = scmp.lt.s32.totalorder %s18, 1
      %s182 = scalar_select %p181, %s18, 1
      %p183 = scmp.lt.s32.totalorder %s180, 15
      %s184 = scalar_select %p183, %s180, 15
      %s185 = smul.addr %s184, 2
      %s186 = smul.addr %s182, 32
      %s187 = sadd.s32 %s185, %s186
      %s188 = smul.addr %s187, 8
      %s189 = scalar_lea.vmem %s3, %s188
      %p190 = scmp.lt.s32.totalorder %s18, 1
      %s191 = scalar_select %p190, %s18, 1
      %p192 = scmp.lt.s32.totalorder %s19, 0
      %s193 = scalar_select %p192, %s19, 0
      %s194 = smul.addr %s193, 54
      %s195 = smul.addr %s191, 54
      %s196 = sadd.s32 %s194, %s195
      %s197 = smul.addr %s196, 8
      %s198 = scalar_lea.vmem %s0, %s197
      %s199 = smul.u32 16, %s19
      %p200 = scmp.lt.s32.totalorder %s18, 1
      %s201 = scalar_select %p200, %s18, 1
      %p202 = scmp.lt.s32.totalorder %s199, 15
      %s203 = scalar_select %p202, %s199, 15
      %s204 = smul.addr %s203, 2
      %s205 = smul.addr %s201, 32
      %s206 = sadd.s32 %s204, %s205
      %s207 = smul.addr %s206, 8
      %s208 = scalar_lea.vmem %s3, %s207
      %s209 = smul.u32 16, %s19
      %v210 = vld [vmem:[%s2] sm:$0x1]
      %v211 = vld [vmem:[%s198] sm:$0xff]
      %v212 = vld [vmem:[%s198 + $0x8] sm:$0xff]
      %v213 = vld [vmem:[%s198 + $0x10] sm:$0xff]
      %v214 = vld [vmem:[%s198 + $0x18] sm:$0xff]
      %v215 = vld [vmem:[%s198 + $0x20] sm:$0xff]
      %v216 = vld [vmem:[%s198 + $0x28] sm:$0xff]
      %v217 = vld [vmem:[%s198 + $0x30] sm:$0xff]
      %v218 = vld [vmem:[%s198 + $0x38] sm:$0xff]
      %v219 = vld [vmem:[%s198 + $0x40] sm:$0xff]
      %v220 = vld [vmem:[%s198 + $0x48] sm:$0xff]
      %v221 = vld [vmem:[%s198 + $0x50] sm:$0xff]
      %v222 = vld [vmem:[%s198 + $0x58] sm:$0xff]
      %v223 = vld [vmem:[%s198 + $0x60] sm:$0xff]
      %v224 = vld [vmem:[%s198 + $0x68] sm:$0xff]
      %v225 = vld [vmem:[%s198 + $0x70] sm:$0xff]
      %v226 = vld [vmem:[%s198 + $0x78] sm:$0xff]
      %v227 = vld [vmem:[%s198 + $0x80] sm:$0xff]
      %v228 = vld [vmem:[%s198 + $0x88] sm:$0xff]
      %v229 = vld [vmem:[%s198 + $0x90] sm:$0xff]
      %v230 = vld [vmem:[%s198 + $0x98] sm:$0xff]
      %v231 = vld [vmem:[%s198 + $0xa0] sm:$0xff]
      %v232 = vld [vmem:[%s198 + $0xa8] sm:$0xff]
      %v233 = vld [vmem:[%s198 + $0xb0] sm:$0xff]
      %v234 = vld [vmem:[%s198 + $0xb8] sm:$0xff]
      %v235 = vld [vmem:[%s1] sm:$0xff]
      %v236 = vld [vmem:[%s1 + $0x8] sm:$0xf]
      %s237 = sadd.s32 0, 24
      %s238 = scalar_lea.vmem %s198, %s237
      %v239 = vld [vmem:[%s238] sm:$0xff]
      %v240 = vld [vmem:[%s238 + $0x8] sm:$0xff]
      %v241 = vld [vmem:[%s238 + $0x10] sm:$0xff]
      %v242 = vld [vmem:[%s238 + $0x18] sm:$0xff]
      %v243 = vld [vmem:[%s238 + $0x20] sm:$0xff]
      %v244 = vld [vmem:[%s238 + $0x28] sm:$0xff]
      %v245 = vld [vmem:[%s238 + $0x30] sm:$0xff]
      %v246 = vld [vmem:[%s238 + $0x38] sm:$0xff]
      %v247 = vld [vmem:[%s238 + $0x40] sm:$0xff]
      %v248 = vld [vmem:[%s238 + $0x48] sm:$0xff]
      %v249 = vld [vmem:[%s238 + $0x50] sm:$0xff]
      %v250 = vld [vmem:[%s238 + $0x58] sm:$0xff]
      %v251 = vld [vmem:[%s238 + $0x60] sm:$0xff]
      %v252 = vld [vmem:[%s238 + $0x68] sm:$0xff]
      %v253 = vld [vmem:[%s238 + $0x70] sm:$0xff]
      %v254 = vld [vmem:[%s238 + $0x78] sm:$0xff]
      %v255 = vld [vmem:[%s238 + $0x80] sm:$0xff]
      %v256 = vld [vmem:[%s238 + $0x88] sm:$0xff]
      %v257 = vld [vmem:[%s238 + $0x90] sm:$0xff]
      %v258 = vld [vmem:[%s238 + $0x98] sm:$0xff]
      %v259 = vld [vmem:[%s238 + $0xa0] sm:$0xff]
      %v260 = vld [vmem:[%s238 + $0xa8] sm:$0xff]
      %v261 = vld [vmem:[%s238 + $0xb0] sm:$0xff]
      %v262 = vld [vmem:[%s238 + $0xb8] sm:$0xff]
      %s263 = scalar_lea.vmem %s1, 16
      %v264 = vld [vmem:[%s263] sm:$0xff]
      %v265 = vld [vmem:[%s263 + $0x8] sm:$0xf]
      %vm266 = vcmask 97280
      %v268 = vsel %vm266, %v239, 0
      %v271 = vsel %vm266, %v240, 0
      %v274 = vsel %vm266, %v241, 0
      %v277 = vsel %vm266, %v242, 0
      %v280 = vsel %vm266, %v243, 0
      %v283 = vsel %vm266, %v244, 0
      %v286 = vsel %vm266, %v245, 0
      %v289 = vsel %vm266, %v246, 0
      %v292 = vsel %vm266, %v247, 0
      %v295 = vsel %vm266, %v248, 0
      %v298 = vsel %vm266, %v249, 0
      %v301 = vsel %vm266, %v250, 0
      %v304 = vsel %vm266, %v251, 0
      %v307 = vsel %vm266, %v252, 0
      %v310 = vsel %vm266, %v253, 0
      %v313 = vsel %vm266, %v254, 0
      %v316 = vsel %vm266, %v255, 0
      %v319 = vsel %vm266, %v256, 0
      %v322 = vsel %vm266, %v257, 0
      %v325 = vsel %vm266, %v258, 0
      %v328 = vsel %vm266, %v259, 0
      %v331 = vsel %vm266, %v260, 0
      %v334 = vsel %vm266, %v261, 0
      %v337 = vsel %vm266, %v262, 0
      %vm339 = vcmask 1043456
      %v341 = vsel %vm339, %v265, 0
      %343 = vmatpush.msra.mxu0 0.0
      %344 = vmatpush.msra.mxu0 0.0
      %345 = vmatpush.msra.mxu0 0.0
      %346 = vmatpush.msra.mxu0 0.0
      %347 = vmatpush.msra.mxu0 0.0
      %348 = vmatpush.msra.mxu0 0.0
      %349 = vmatpush.msra.mxu0 0.0
      %350 = vmatpush.msra.mxu0 0.0
      %351 = vmatpush.msra.mxu0 0.0
      %352 = vmatpush.msra.mxu0 0.0
      %353 = vmatpush.msra.mxu0 0.0
      %354 = vmatpush.msra.mxu0 0.0
      %355 = vmatpush.msra.mxu0 0.0
      %356 = vmatpush.msra.mxu0 0.0
      %357 = vmatpush.msra.mxu0 %v341
      %358 = vmatpush.msra.mxu0 %v264
      %359 = vmatmul.f32.gmra.mxu0 %v268
      %v360 = vpop.f32.mrf.mxu0
      %v361 = vadd.f32 0.0, %v360
      %362 = vmatmul.f32.gmra.mxu0 %v271
      %v363 = vpop.f32.mrf.mxu0
      %v364 = vadd.f32 0.0, %v363
      %365 = vmatmul.f32.gmra.mxu0 %v274
      %v366 = vpop.f32.mrf.mxu0
      %367 = vmatmul.f32.gmra.mxu0 %v277
      %v368 = vpop.f32.mrf.mxu0
      %v369 = vadd.f32 0.0, %v368
      %370 = vmatmul.f32.gmra.mxu0 %v280
      %v371 = vpop.f32.mrf.mxu0
      %v372 = vadd.f32 0.0, %v371
      %373 = vmatmul.f32.gmra.mxu0 %v283
      %v374 = vpop.f32.mrf.mxu0
      %375 = vmatmul.f32.gmra.mxu0 %v286
      %v376 = vpop.f32.mrf.mxu0
      %v377 = vadd.f32 0.0, %v376
      %378 = vmatmul.f32.gmra.mxu0 %v289
      %v379 = vpop.f32.mrf.mxu0
      %v380 = vadd.f32 0.0, %v379
      %381 = vmatmul.f32.gmra.mxu0 %v292
      %v382 = vpop.f32.mrf.mxu0
      %383 = vmatmul.f32.gmra.mxu0 %v295
      %v384 = vpop.f32.mrf.mxu0
      %v385 = vadd.f32 0.0, %v384
      %386 = vmatmul.f32.gmra.mxu0 %v298
      %v387 = vpop.f32.mrf.mxu0
      %v388 = vadd.f32 0.0, %v387
      %389 = vmatmul.f32.gmra.mxu0 %v301
      %v390 = vpop.f32.mrf.mxu0
      %391 = vmatmul.f32.gmra.mxu0 %v304
      %v392 = vpop.f32.mrf.mxu0
      %v393 = vadd.f32 0.0, %v392
      %394 = vmatmul.f32.gmra.mxu0 %v307
      %v395 = vpop.f32.mrf.mxu0
      %v396 = vadd.f32 0.0, %v395
      %397 = vmatmul.f32.gmra.mxu0 %v310
      %v398 = vpop.f32.mrf.mxu0
      %399 = vmatmul.f32.gmra.mxu0 %v313
      %v400 = vpop.f32.mrf.mxu0
      %v401 = vadd.f32 0.0, %v400
      %402 = vmatmul.f32.gmra.mxu0 %v316
      %v403 = vpop.f32.mrf.mxu0
      %v404 = vadd.f32 0.0, %v403
      %405 = vmatmul.f32.gmra.mxu0 %v319
      %v406 = vpop.f32.mrf.mxu0
      %407 = vmatmul.f32.gmra.mxu0 %v322
      %v408 = vpop.f32.mrf.mxu0
      %v409 = vadd.f32 0.0, %v408
      %410 = vmatmul.f32.gmra.mxu0 %v325
      %v411 = vpop.f32.mrf.mxu0
      %v412 = vadd.f32 0.0, %v411
      %413 = vmatmul.f32.gmra.mxu0 %v328
      %v414 = vpop.f32.mrf.mxu0
      %415 = vmatmul.f32.gmra.mxu0 %v331
      %v416 = vpop.f32.mrf.mxu0
      %v417 = vadd.f32 0.0, %v416
      %418 = vmatmul.f32.gmra.mxu0 %v334
      %v419 = vpop.f32.mrf.mxu0
      %v420 = vadd.f32 0.0, %v419
      %421 = vmatmul.f32.gmra.mxu0 %v337
      %v422 = vpop.f32.mrf.mxu0
      %423 = vdwg.mxu0
      %v425 = vsel %vm266, %v211, 0
      %v428 = vsel %vm266, %v212, 0
      %v431 = vsel %vm266, %v213, 0
      %v434 = vsel %vm266, %v214, 0
      %v437 = vsel %vm266, %v215, 0
      %v440 = vsel %vm266, %v216, 0
      %v443 = vsel %vm266, %v217, 0
      %v446 = vsel %vm266, %v218, 0
      %v449 = vsel %vm266, %v219, 0
      %v452 = vsel %vm266, %v220, 0
      %v455 = vsel %vm266, %v221, 0
      %v458 = vsel %vm266, %v222, 0
      %v461 = vsel %vm266, %v223, 0
      %v464 = vsel %vm266, %v224, 0
      %v467 = vsel %vm266, %v225, 0
      %v470 = vsel %vm266, %v226, 0
      %v473 = vsel %vm266, %v227, 0
      %v476 = vsel %vm266, %v228, 0
      %v479 = vsel %vm266, %v229, 0
      %v482 = vsel %vm266, %v230, 0
      %v485 = vsel %vm266, %v231, 0
      %v488 = vsel %vm266, %v232, 0
      %v491 = vsel %vm266, %v233, 0
      %v494 = vsel %vm266, %v234, 0
      %v497 = vsel %vm339, %v236, 0
      %499 = vmatpush.msra.mxu0 0.0
      %500 = vmatpush.msra.mxu0 0.0
      %501 = vmatpush.msra.mxu0 0.0
      %502 = vmatpush.msra.mxu0 0.0
      %503 = vmatpush.msra.mxu0 0.0
      %504 = vmatpush.msra.mxu0 0.0
      %505 = vmatpush.msra.mxu0 0.0
      %506 = vmatpush.msra.mxu0 0.0
      %507 = vmatpush.msra.mxu0 0.0
      %508 = vmatpush.msra.mxu0 0.0
      %509 = vmatpush.msra.mxu0 0.0
      %510 = vmatpush.msra.mxu0 0.0
      %511 = vmatpush.msra.mxu0 0.0
      %512 = vmatpush.msra.mxu0 0.0
      %513 = vmatpush.msra.mxu0 %v497
      %514 = vmatpush.msra.mxu0 %v235
      %515 = vmatmul.f32.gmra.mxu0 %v425
      %v516 = vpop.f32.mrf.mxu0
      %v517 = vadd.f32 %v361, %v516
      %518 = vmatmul.f32.gmra.mxu0 %v428
      %v519 = vpop.f32.mrf.mxu0
      %v520 = vadd.f32 %v364, %v519
      %521 = vmatmul.f32.gmra.mxu0 %v431
      %v522 = vpop.f32.mrf.mxu0
      %523 = vmatmul.f32.gmra.mxu0 %v434
      %v524 = vpop.f32.mrf.mxu0
      %v525 = vadd.f32 %v369, %v524
      %526 = vmatmul.f32.gmra.mxu0 %v437
      %v527 = vpop.f32.mrf.mxu0
      %v528 = vadd.f32 %v372, %v527
      %529 = vmatmul.f32.gmra.mxu0 %v440
      %v530 = vpop.f32.mrf.mxu0
      %531 = vmatmul.f32.gmra.mxu0 %v443
      %v532 = vpop.f32.mrf.mxu0
      %v533 = vadd.f32 %v377, %v532
      %534 = vmatmul.f32.gmra.mxu0 %v446
      %v535 = vpop.f32.mrf.mxu0
      %v536 = vadd.f32 %v380, %v535
      %537 = vmatmul.f32.gmra.mxu0 %v449
      %v538 = vpop.f32.mrf.mxu0
      %539 = vmatmul.f32.gmra.mxu0 %v452
      %v540 = vpop.f32.mrf.mxu0
      %v541 = vadd.f32 %v385, %v540
      %542 = vmatmul.f32.gmra.mxu0 %v455
      %v543 = vpop.f32.mrf.mxu0
      %v544 = vadd.f32 %v388, %v543
      %545 = vmatmul.f32.gmra.mxu0 %v458
      %v546 = vpop.f32.mrf.mxu0
      %547 = vmatmul.f32.gmra.mxu0 %v461
      %v548 = vpop.f32.mrf.mxu0
      %v549 = vadd.f32 %v393, %v548
      %550 = vmatmul.f32.gmra.mxu0 %v464
      %v551 = vpop.f32.mrf.mxu0
      %v552 = vadd.f32 %v396, %v551
      %553 = vmatmul.f32.gmra.mxu0 %v467
      %v554 = vpop.f32.mrf.mxu0
      %555 = vmatmul.f32.gmra.mxu0 %v470
      %v556 = vpop.f32.mrf.mxu0
      %v557 = vadd.f32 %v401, %v556
      %558 = vmatmul.f32.gmra.mxu0 %v473
      %v559 = vpop.f32.mrf.mxu0
      %v560 = vadd.f32 %v404, %v559
      %561 = vmatmul.f32.gmra.mxu0 %v476
      %v562 = vpop.f32.mrf.mxu0
      %563 = vmatmul.f32.gmra.mxu0 %v479
      %v564 = vpop.f32.mrf.mxu0
      %v565 = vadd.f32 %v409, %v564
      %566 = vmatmul.f32.gmra.mxu0 %v482
      %v567 = vpop.f32.mrf.mxu0
      %v568 = vadd.f32 %v412, %v567
      %569 = vmatmul.f32.gmra.mxu0 %v485
      %v570 = vpop.f32.mrf.mxu0
      %571 = vmatmul.f32.gmra.mxu0 %v488
      %v572 = vpop.f32.mrf.mxu0
      %v573 = vadd.f32 %v417, %v572
      %574 = vmatmul.f32.gmra.mxu0 %v491
      %v575 = vpop.f32.mrf.mxu0
      %v576 = vadd.f32 %v420, %v575
      %577 = vmatmul.f32.gmra.mxu0 %v494
      %v578 = vpop.f32.mrf.mxu0
      %579 = vdwg.mxu0
      %s580 = sadd.s32 0, 48
      %s581 = scalar_lea.vmem %s198, %s580
      %v582 = vld [vmem:[%s581] sm:$0xff]
      %v583 = vld [vmem:[%s581 + $0x8] sm:$0xff]
      %v584 = vld [vmem:[%s581 + $0x10] sm:$0xff]
      %v585 = vld [vmem:[%s581 + $0x18] sm:$0xff]
      %v586 = vld [vmem:[%s581 + $0x20] sm:$0xff]
      %v587 = vld [vmem:[%s581 + $0x28] sm:$0xff]
      %v588 = vld [vmem:[%s581 + $0x30] sm:$0xff]
      %v589 = vld [vmem:[%s581 + $0x38] sm:$0xff]
      %v590 = vld [vmem:[%s581 + $0x40] sm:$0xff]
      %v591 = vld [vmem:[%s581 + $0x48] sm:$0xff]
      %v592 = vld [vmem:[%s581 + $0x50] sm:$0xff]
      %v593 = vld [vmem:[%s581 + $0x58] sm:$0xff]
      %v594 = vld [vmem:[%s581 + $0x60] sm:$0xff]
      %v595 = vld [vmem:[%s581 + $0x68] sm:$0xff]
      %v596 = vld [vmem:[%s581 + $0x70] sm:$0xff]
      %v597 = vld [vmem:[%s581 + $0x78] sm:$0xff]
      %v598 = vld [vmem:[%s581 + $0x80] sm:$0xff]
      %v599 = vld [vmem:[%s581 + $0x88] sm:$0xff]
      %v600 = vld [vmem:[%s581 + $0x90] sm:$0xff]
      %v601 = vld [vmem:[%s581 + $0x98] sm:$0xff]
      %v602 = vld [vmem:[%s581 + $0xa0] sm:$0xff]
      %v603 = vld [vmem:[%s581 + $0xa8] sm:$0xff]
      %v604 = vld [vmem:[%s581 + $0xb0] sm:$0xff]
      %v605 = vld [vmem:[%s581 + $0xb8] sm:$0xff]
      %s606 = scalar_lea.vmem %s1, 32
      %v607 = vld [vmem:[%s606] sm:$0xff]
      %v608 = vld [vmem:[%s606 + $0x8] sm:$0xf]
      %v610 = vsel %vm266, %v582, 0
      %v613 = vsel %vm266, %v583, 0
      %v616 = vsel %vm266, %v584, 0
      %v619 = vsel %vm266, %v585, 0
      %v622 = vsel %vm266, %v586, 0
      %v625 = vsel %vm266, %v587, 0
      %v628 = vsel %vm266, %v588, 0
      %v631 = vsel %vm266, %v589, 0
      %v634 = vsel %vm266, %v590, 0
      %v637 = vsel %vm266, %v591, 0
      %v640 = vsel %vm266, %v592, 0
      %v643 = vsel %vm266, %v593, 0
      %v646 = vsel %vm266, %v594, 0
      %v649 = vsel %vm266, %v595, 0
      %v652 = vsel %vm266, %v596, 0
      %v655 = vsel %vm266, %v597, 0
      %v658 = vsel %vm266, %v598, 0
      %v661 = vsel %vm266, %v599, 0
      %v664 = vsel %vm266, %v600, 0
      %v667 = vsel %vm266, %v601, 0
      %v670 = vsel %vm266, %v602, 0
      %v673 = vsel %vm266, %v603, 0
      %v676 = vsel %vm266, %v604, 0
      %v679 = vsel %vm266, %v605, 0
      %v682 = vsel %vm339, %v608, 0
      %684 = vmatpush.msra.mxu0 0.0
      %685 = vmatpush.msra.mxu0 0.0
      %686 = vmatpush.msra.mxu0 0.0
      %687 = vmatpush.msra.mxu0 0.0
      %688 = vmatpush.msra.mxu0 0.0
      %689 = vmatpush.msra.mxu0 0.0
      %690 = vmatpush.msra.mxu0 0.0
      %691 = vmatpush.msra.mxu0 0.0
      %692 = vmatpush.msra.mxu0 0.0
      %693 = vmatpush.msra.mxu0 0.0
      %694 = vmatpush.msra.mxu0 0.0
      %695 = vmatpush.msra.mxu0 0.0
      %696 = vmatpush.msra.mxu0 0.0
      %697 = vmatpush.msra.mxu0 0.0
      %698 = vmatpush.msra.mxu0 %v682
      %699 = vmatpush.msra.mxu0 %v607
      %700 = vmatmul.f32.gmra.mxu0 %v610
      %v701 = vpop.f32.mrf.mxu0
      %v702 = vadd.f32 0.0, %v701
      %703 = vmatmul.f32.gmra.mxu0 %v613
      %v704 = vpop.f32.mrf.mxu0
      %v705 = vadd.f32 0.0, %v704
      %706 = vmatmul.f32.gmra.mxu0 %v616
      %v707 = vpop.f32.mrf.mxu0
      %708 = vmatmul.f32.gmra.mxu0 %v619
      %v709 = vpop.f32.mrf.mxu0
      %v710 = vadd.f32 0.0, %v709
      %711 = vmatmul.f32.gmra.mxu0 %v622
      %v712 = vpop.f32.mrf.mxu0
      %v713 = vadd.f32 0.0, %v712
      %714 = vmatmul.f32.gmra.mxu0 %v625
      %v715 = vpop.f32.mrf.mxu0
      %716 = vmatmul.f32.gmra.mxu0 %v628
      %v717 = vpop.f32.mrf.mxu0
      %v718 = vadd.f32 0.0, %v717
      %719 = vmatmul.f32.gmra.mxu0 %v631
      %v720 = vpop.f32.mrf.mxu0
      %v721 = vadd.f32 0.0, %v720
      %722 = vmatmul.f32.gmra.mxu0 %v634
      %v723 = vpop.f32.mrf.mxu0
      %724 = vmatmul.f32.gmra.mxu0 %v637
      %v725 = vpop.f32.mrf.mxu0
      %v726 = vadd.f32 0.0, %v725
      %727 = vmatmul.f32.gmra.mxu0 %v640
      %v728 = vpop.f32.mrf.mxu0
      %v729 = vadd.f32 0.0, %v728
      %730 = vmatmul.f32.gmra.mxu0 %v643
      %v731 = vpop.f32.mrf.mxu0
      %732 = vmatmul.f32.gmra.mxu0 %v646
      %v733 = vpop.f32.mrf.mxu0
      %v734 = vadd.f32 0.0, %v733
      %735 = vmatmul.f32.gmra.mxu0 %v649
      %v736 = vpop.f32.mrf.mxu0
      %v737 = vadd.f32 0.0, %v736
      %738 = vmatmul.f32.gmra.mxu0 %v652
      %v739 = vpop.f32.mrf.mxu0
      %740 = vmatmul.f32.gmra.mxu0 %v655
      %v741 = vpop.f32.mrf.mxu0
      %v742 = vadd.f32 0.0, %v741
      %743 = vmatmul.f32.gmra.mxu0 %v658
      %v744 = vpop.f32.mrf.mxu0
      %v745 = vadd.f32 0.0, %v744
      %746 = vmatmul.f32.gmra.mxu0 %v661
      %v747 = vpop.f32.mrf.mxu0
      %748 = vmatmul.f32.gmra.mxu0 %v664
      %v749 = vpop.f32.mrf.mxu0
      %v750 = vadd.f32 0.0, %v749
      %751 = vmatmul.f32.gmra.mxu0 %v667
      %v752 = vpop.f32.mrf.mxu0
      %v753 = vadd.f32 0.0, %v752
      %754 = vmatmul.f32.gmra.mxu0 %v670
      %v755 = vpop.f32.mrf.mxu0
      %756 = vmatmul.f32.gmra.mxu0 %v673
      %v757 = vpop.f32.mrf.mxu0
      %v758 = vadd.f32 0.0, %v757
      %759 = vmatmul.f32.gmra.mxu0 %v676
      %v760 = vpop.f32.mrf.mxu0
      %v761 = vadd.f32 0.0, %v760
      %762 = vmatmul.f32.gmra.mxu0 %v679
      %v763 = vpop.f32.mrf.mxu0
      %764 = vdwg.mxu0
      %v765 = vadd.f32 %v517, %v702
      %v766 = vadd.f32 %v520, %v705
      %v767 = vadd.f32 %v525, %v710
      %v768 = vadd.f32 %v528, %v713
      %v769 = vadd.f32 %v533, %v718
      %v770 = vadd.f32 %v536, %v721
      %v771 = vadd.f32 %v541, %v726
      %v772 = vadd.f32 %v544, %v729
      %v773 = vadd.f32 %v549, %v734
      %v774 = vadd.f32 %v552, %v737
      %v775 = vadd.f32 %v557, %v742
      %v776 = vadd.f32 %v560, %v745
      %v777 = vadd.f32 %v565, %v750
      %v778 = vadd.f32 %v568, %v753
      %v779 = vadd.f32 %v573, %v758
      %v780 = vadd.f32 %v576, %v761
      %v782 = vperm.slane %v210, 0
      %v784 = vadd.f32 %v765, %v782
      %v785 = vadd.f32 %v766, %v782
      %v786 = vadd.f32 %v767, %v782
      %v787 = vadd.f32 %v768, %v782
      %v788 = vadd.f32 %v769, %v782
      %v789 = vadd.f32 %v770, %v782
      %v790 = vadd.f32 %v771, %v782
      %v791 = vadd.f32 %v772, %v782
      %v792 = vadd.f32 %v773, %v782
      %v793 = vadd.f32 %v774, %v782
      %v794 = vadd.f32 %v775, %v782
      %v795 = vadd.f32 %v776, %v782
      %v796 = vadd.f32 %v777, %v782
      %v797 = vadd.f32 %v778, %v782
      %v798 = vadd.f32 %v779, %v782
      %v799 = vadd.f32 %v780, %v782
      %v800 = vmax.f32 %v784, 0.0
      %v801 = vmax.f32 %v785, 0.0
      %v802 = vmax.f32 %v786, 0.0
      %v803 = vmax.f32 %v787, 0.0
      %v804 = vmax.f32 %v788, 0.0
      %v805 = vmax.f32 %v789, 0.0
      %v806 = vmax.f32 %v790, 0.0
      %v807 = vmax.f32 %v791, 0.0
      %v808 = vmax.f32 %v792, 0.0
      %v809 = vmax.f32 %v793, 0.0
      %v810 = vmax.f32 %v794, 0.0
      %v811 = vmax.f32 %v795, 0.0
      %v812 = vmax.f32 %v796, 0.0
      %v813 = vmax.f32 %v797, 0.0
      %v814 = vmax.f32 %v798, 0.0
      %v815 = vmax.f32 %v799, 0.0
      %816 = vst [vmem:[%s208] sm:$0xff] %v800
      %817 = vst [vmem:[%s208 + $0x8] sm:$0xff] %v801
      %818 = vst [vmem:[%s208 + $0x10] sm:$0xff] %v802
      %819 = vst [vmem:[%s208 + $0x18] sm:$0xff] %v803
      %820 = vst [vmem:[%s208 + $0x20] sm:$0xff] %v804
      %821 = vst [vmem:[%s208 + $0x28] sm:$0xff] %v805
      %822 = vst [vmem:[%s208 + $0x30] sm:$0xff] %v806
      %823 = vst [vmem:[%s208 + $0x38] sm:$0xff] %v807
      %824 = vst [vmem:[%s208 + $0x40] sm:$0xff] %v808
      %825 = vst [vmem:[%s208 + $0x48] sm:$0xff] %v809
      %826 = vst [vmem:[%s208 + $0x50] sm:$0xff] %v810
      %827 = vst [vmem:[%s208 + $0x58] sm:$0xff] %v811
      %828 = vst [vmem:[%s208 + $0x60] sm:$0xff] %v812
      %829 = vst [vmem:[%s208 + $0x68] sm:$0xff] %v813
      %830 = vst [vmem:[%s208 + $0x70] sm:$0xff] %v814
      %831 = vst [vmem:[%s208 + $0x78] sm:$0xff] %v815
      %s832 = scalar_lea.vmem %s198, 192
      %v833 = vld [vmem:[%s832] sm:$0xff]
      %v834 = vld [vmem:[%s832 + $0x8] sm:$0xff]
      %v835 = vld [vmem:[%s832 + $0x10] sm:$0xff]
      %v836 = vld [vmem:[%s832 + $0x18] sm:$0xff]
      %v837 = vld [vmem:[%s832 + $0x20] sm:$0xff]
      %v838 = vld [vmem:[%s832 + $0x28] sm:$0xff]
      %v839 = vld [vmem:[%s832 + $0x30] sm:$0xff]
      %v840 = vld [vmem:[%s832 + $0x38] sm:$0xff]
      %v841 = vld [vmem:[%s832 + $0x40] sm:$0xff]
      %v842 = vld [vmem:[%s832 + $0x48] sm:$0xff]
      %v843 = vld [vmem:[%s832 + $0x50] sm:$0xff]
      %v844 = vld [vmem:[%s832 + $0x58] sm:$0xff]
      %v845 = vld [vmem:[%s832 + $0x60] sm:$0xff]
      %v846 = vld [vmem:[%s832 + $0x68] sm:$0xff]
      %v847 = vld [vmem:[%s832 + $0x70] sm:$0xff]
      %v848 = vld [vmem:[%s832 + $0x78] sm:$0xff]
      %v849 = vld [vmem:[%s832 + $0x80] sm:$0xff]
      %v850 = vld [vmem:[%s832 + $0x88] sm:$0xff]
      %v851 = vld [vmem:[%s832 + $0x90] sm:$0xff]
      %v852 = vld [vmem:[%s832 + $0x98] sm:$0xff]
      %v853 = vld [vmem:[%s832 + $0xa0] sm:$0xff]
      %v854 = vld [vmem:[%s832 + $0xa8] sm:$0xff]
      %v855 = vld [vmem:[%s832 + $0xb0] sm:$0xff]
      %v856 = vld [vmem:[%s832 + $0xb8] sm:$0xff]
      %v857 = vld [vmem:[%s1] sm:$0xff]
      %v858 = vld [vmem:[%s1 + $0x8] sm:$0xf]
      %s859 = sadd.s32 192, 24
      %s860 = scalar_lea.vmem %s198, %s859
      %v861 = vld [vmem:[%s860] sm:$0xff]
      %v862 = vld [vmem:[%s860 + $0x8] sm:$0xff]
      %v863 = vld [vmem:[%s860 + $0x10] sm:$0xff]
      %v864 = vld [vmem:[%s860 + $0x18] sm:$0xff]
      %v865 = vld [vmem:[%s860 + $0x20] sm:$0xff]
      %v866 = vld [vmem:[%s860 + $0x28] sm:$0xff]
      %v867 = vld [vmem:[%s860 + $0x30] sm:$0xff]
      %v868 = vld [vmem:[%s860 + $0x38] sm:$0xff]
      %v869 = vld [vmem:[%s860 + $0x40] sm:$0xff]
      %v870 = vld [vmem:[%s860 + $0x48] sm:$0xff]
      %v871 = vld [vmem:[%s860 + $0x50] sm:$0xff]
      %v872 = vld [vmem:[%s860 + $0x58] sm:$0xff]
      %v873 = vld [vmem:[%s860 + $0x60] sm:$0xff]
      %v874 = vld [vmem:[%s860 + $0x68] sm:$0xff]
      %v875 = vld [vmem:[%s860 + $0x70] sm:$0xff]
      %v876 = vld [vmem:[%s860 + $0x78] sm:$0xff]
      %v877 = vld [vmem:[%s860 + $0x80] sm:$0xff]
      %v878 = vld [vmem:[%s860 + $0x88] sm:$0xff]
      %v879 = vld [vmem:[%s860 + $0x90] sm:$0xff]
      %v880 = vld [vmem:[%s860 + $0x98] sm:$0xff]
      %v881 = vld [vmem:[%s860 + $0xa0] sm:$0xff]
      %v882 = vld [vmem:[%s860 + $0xa8] sm:$0xff]
      %v883 = vld [vmem:[%s860 + $0xb0] sm:$0xff]
      %v884 = vld [vmem:[%s860 + $0xb8] sm:$0xff]
      %v885 = vld [vmem:[%s263] sm:$0xff]
      %v886 = vld [vmem:[%s263 + $0x8] sm:$0xf]
      %v888 = vsel %vm266, %v861, 0
      %v891 = vsel %vm266, %v862, 0
      %v894 = vsel %vm266, %v863, 0
      %v897 = vsel %vm266, %v864, 0
      %v900 = vsel %vm266, %v865, 0
      %v903 = vsel %vm266, %v866, 0
      %v906 = vsel %vm266, %v867, 0
      %v909 = vsel %vm266, %v868, 0
      %v912 = vsel %vm266, %v869, 0
      %v915 = vsel %vm266, %v870, 0
      %v918 = vsel %vm266, %v871, 0
      %v921 = vsel %vm266, %v872, 0
      %v924 = vsel %vm266, %v873, 0
      %v927 = vsel %vm266, %v874, 0
      %v930 = vsel %vm266, %v875, 0
      %v933 = vsel %vm266, %v876, 0
      %v936 = vsel %vm266, %v877, 0
      %v939 = vsel %vm266, %v878, 0
      %v942 = vsel %vm266, %v879, 0
      %v945 = vsel %vm266, %v880, 0
      %v948 = vsel %vm266, %v881, 0
      %v951 = vsel %vm266, %v882, 0
      %v954 = vsel %vm266, %v883, 0
      %v957 = vsel %vm266, %v884, 0
      %v960 = vsel %vm339, %v886, 0
      %962 = vmatpush.msra.mxu0 0.0
      %963 = vmatpush.msra.mxu0 0.0
      %964 = vmatpush.msra.mxu0 0.0
      %965 = vmatpush.msra.mxu0 0.0
      %966 = vmatpush.msra.mxu0 0.0
      %967 = vmatpush.msra.mxu0 0.0
      %968 = vmatpush.msra.mxu0 0.0
      %969 = vmatpush.msra.mxu0 0.0
      %970 = vmatpush.msra.mxu0 0.0
      %971 = vmatpush.msra.mxu0 0.0
      %972 = vmatpush.msra.mxu0 0.0
      %973 = vmatpush.msra.mxu0 0.0
      %974 = vmatpush.msra.mxu0 0.0
      %975 = vmatpush.msra.mxu0 0.0
      %976 = vmatpush.msra.mxu0 %v960
      %977 = vmatpush.msra.mxu0 %v885
      %978 = vmatmul.f32.gmra.mxu0 %v888
      %v979 = vpop.f32.mrf.mxu0
      %v980 = vadd.f32 0.0, %v979
      %981 = vmatmul.f32.gmra.mxu0 %v891
      %v982 = vpop.f32.mrf.mxu0
      %v983 = vadd.f32 0.0, %v982
      %984 = vmatmul.f32.gmra.mxu0 %v894
      %v985 = vpop.f32.mrf.mxu0
      %986 = vmatmul.f32.gmra.mxu0 %v897
      %v987 = vpop.f32.mrf.mxu0
      %v988 = vadd.f32 0.0, %v987
      %989 = vmatmul.f32.gmra.mxu0 %v900
      %v990 = vpop.f32.mrf.mxu0
      %v991 = vadd.f32 0.0, %v990
      %992 = vmatmul.f32.gmra.mxu0 %v903
      %v993 = vpop.f32.mrf.mxu0
      %994 = vmatmul.f32.gmra.mxu0 %v906
      %v995 = vpop.f32.mrf.mxu0
      %v996 = vadd.f32 0.0, %v995
      %997 = vmatmul.f32.gmra.mxu0 %v909
      %v998 = vpop.f32.mrf.mxu0
      %v999 = vadd.f32 0.0, %v998
      %1000 = vmatmul.f32.gmra.mxu0 %v912
      %v1001 = vpop.f32.mrf.mxu0
      %1002 = vmatmul.f32.gmra.mxu0 %v915
      %v1003 = vpop.f32.mrf.mxu0
      %v1004 = vadd.f32 0.0, %v1003
      %1005 = vmatmul.f32.gmra.mxu0 %v918
      %v1006 = vpop.f32.mrf.mxu0
      %v1007 = vadd.f32 0.0, %v1006
      %1008 = vmatmul.f32.gmra.mxu0 %v921
      %v1009 = vpop.f32.mrf.mxu0
      %1010 = vmatmul.f32.gmra.mxu0 %v924
      %v1011 = vpop.f32.mrf.mxu0
      %v1012 = vadd.f32 0.0, %v1011
      %1013 = vmatmul.f32.gmra.mxu0 %v927
      %v1014 = vpop.f32.mrf.mxu0
      %v1015 = vadd.f32 0.0, %v1014
      %1016 = vmatmul.f32.gmra.mxu0 %v930
      %v1017 = vpop.f32.mrf.mxu0
      %1018 = vmatmul.f32.gmra.mxu0 %v933
      %v1019 = vpop.f32.mrf.mxu0
      %v1020 = vadd.f32 0.0, %v1019
      %1021 = vmatmul.f32.gmra.mxu0 %v936
      %v1022 = vpop.f32.mrf.mxu0
      %v1023 = vadd.f32 0.0, %v1022
      %1024 = vmatmul.f32.gmra.mxu0 %v939
      %v1025 = vpop.f32.mrf.mxu0
      %1026 = vmatmul.f32.gmra.mxu0 %v942
      %v1027 = vpop.f32.mrf.mxu0
      %v1028 = vadd.f32 0.0, %v1027
      %1029 = vmatmul.f32.gmra.mxu0 %v945
      %v1030 = vpop.f32.mrf.mxu0
      %v1031 = vadd.f32 0.0, %v1030
      %1032 = vmatmul.f32.gmra.mxu0 %v948
      %v1033 = vpop.f32.mrf.mxu0
      %1034 = vmatmul.f32.gmra.mxu0 %v951
      %v1035 = vpop.f32.mrf.mxu0
      %v1036 = vadd.f32 0.0, %v1035
      %1037 = vmatmul.f32.gmra.mxu0 %v954
      %v1038 = vpop.f32.mrf.mxu0
      %v1039 = vadd.f32 0.0, %v1038
      %1040 = vmatmul.f32.gmra.mxu0 %v957
      %v1041 = vpop.f32.mrf.mxu0
      %1042 = vdwg.mxu0
      %v1044 = vsel %vm266, %v833, 0
      %v1047 = vsel %vm266, %v834, 0
      %v1050 = vsel %vm266, %v835, 0
      %v1053 = vsel %vm266, %v836, 0
      %v1056 = vsel %vm266, %v837, 0
      %v1059 = vsel %vm266, %v838, 0
      %v1062 = vsel %vm266, %v839, 0
      %v1065 = vsel %vm266, %v840, 0
      %v1068 = vsel %vm266, %v841, 0
      %v1071 = vsel %vm266, %v842, 0
      %v1074 = vsel %vm266, %v843, 0
      %v1077 = vsel %vm266, %v844, 0
      %v1080 = vsel %vm266, %v845, 0
      %v1083 = vsel %vm266, %v846, 0
      %v1086 = vsel %vm266, %v847, 0
      %v1089 = vsel %vm266, %v848, 0
      %v1092 = vsel %vm266, %v849, 0
      %v1095 = vsel %vm266, %v850, 0
      %v1098 = vsel %vm266, %v851, 0
      %v1101 = vsel %vm266, %v852, 0
      %v1104 = vsel %vm266, %v853, 0
      %v1107 = vsel %vm266, %v854, 0
      %v1110 = vsel %vm266, %v855, 0
      %v1113 = vsel %vm266, %v856, 0
      %v1116 = vsel %vm339, %v858, 0
      %1118 = vmatpush.msra.mxu0 0.0
      %1119 = vmatpush.msra.mxu0 0.0
      %1120 = vmatpush.msra.mxu0 0.0
      %1121 = vmatpush.msra.mxu0 0.0
      %1122 = vmatpush.msra.mxu0 0.0
      %1123 = vmatpush.msra.mxu0 0.0
      %1124 = vmatpush.msra.mxu0 0.0
      %1125 = vmatpush.msra.mxu0 0.0
      %1126 = vmatpush.msra.mxu0 0.0
      %1127 = vmatpush.msra.mxu0 0.0
      %1128 = vmatpush.msra.mxu0 0.0
      %1129 = vmatpush.msra.mxu0 0.0
      %1130 = vmatpush.msra.mxu0 0.0
      %1131 = vmatpush.msra.mxu0 0.0
      %1132 = vmatpush.msra.mxu0 %v1116
      %1133 = vmatpush.msra.mxu0 %v857
      %1134 = vmatmul.f32.gmra.mxu0 %v1044
      %v1135 = vpop.f32.mrf.mxu0
      %v1136 = vadd.f32 %v980, %v1135
      %1137 = vmatmul.f32.gmra.mxu0 %v1047
      %v1138 = vpop.f32.mrf.mxu0
      %v1139 = vadd.f32 %v983, %v1138
      %1140 = vmatmul.f32.gmra.mxu0 %v1050
      %v1141 = vpop.f32.mrf.mxu0
      %1142 = vmatmul.f32.gmra.mxu0 %v1053
      %v1143 = vpop.f32.mrf.mxu0
      %v1144 = vadd.f32 %v988, %v1143
      %1145 = vmatmul.f32.gmra.mxu0 %v1056
      %v1146 = vpop.f32.mrf.mxu0
      %v1147 = vadd.f32 %v991, %v1146
      %1148 = vmatmul.f32.gmra.mxu0 %v1059
      %v1149 = vpop.f32.mrf.mxu0
      %1150 = vmatmul.f32.gmra.mxu0 %v1062
      %v1151 = vpop.f32.mrf.mxu0
      %v1152 = vadd.f32 %v996, %v1151
      %1153 = vmatmul.f32.gmra.mxu0 %v1065
      %v1154 = vpop.f32.mrf.mxu0
      %v1155 = vadd.f32 %v999, %v1154
      %1156 = vmatmul.f32.gmra.mxu0 %v1068
      %v1157 = vpop.f32.mrf.mxu0
      %1158 = vmatmul.f32.gmra.mxu0 %v1071
      %v1159 = vpop.f32.mrf.mxu0
      %v1160 = vadd.f32 %v1004, %v1159
      %1161 = vmatmul.f32.gmra.mxu0 %v1074
      %v1162 = vpop.f32.mrf.mxu0
      %v1163 = vadd.f32 %v1007, %v1162
      %1164 = vmatmul.f32.gmra.mxu0 %v1077
      %v1165 = vpop.f32.mrf.mxu0
      %1166 = vmatmul.f32.gmra.mxu0 %v1080
      %v1167 = vpop.f32.mrf.mxu0
      %v1168 = vadd.f32 %v1012, %v1167
      %1169 = vmatmul.f32.gmra.mxu0 %v1083
      %v1170 = vpop.f32.mrf.mxu0
      %v1171 = vadd.f32 %v1015, %v1170
      %1172 = vmatmul.f32.gmra.mxu0 %v1086
      %v1173 = vpop.f32.mrf.mxu0
      %1174 = vmatmul.f32.gmra.mxu0 %v1089
      %v1175 = vpop.f32.mrf.mxu0
      %v1176 = vadd.f32 %v1020, %v1175
      %1177 = vmatmul.f32.gmra.mxu0 %v1092
      %v1178 = vpop.f32.mrf.mxu0
      %v1179 = vadd.f32 %v1023, %v1178
      %1180 = vmatmul.f32.gmra.mxu0 %v1095
      %v1181 = vpop.f32.mrf.mxu0
      %1182 = vmatmul.f32.gmra.mxu0 %v1098
      %v1183 = vpop.f32.mrf.mxu0
      %v1184 = vadd.f32 %v1028, %v1183
      %1185 = vmatmul.f32.gmra.mxu0 %v1101
      %v1186 = vpop.f32.mrf.mxu0
      %v1187 = vadd.f32 %v1031, %v1186
      %1188 = vmatmul.f32.gmra.mxu0 %v1104
      %v1189 = vpop.f32.mrf.mxu0
      %1190 = vmatmul.f32.gmra.mxu0 %v1107
      %v1191 = vpop.f32.mrf.mxu0
      %v1192 = vadd.f32 %v1036, %v1191
      %1193 = vmatmul.f32.gmra.mxu0 %v1110
      %v1194 = vpop.f32.mrf.mxu0
      %v1195 = vadd.f32 %v1039, %v1194
      %1196 = vmatmul.f32.gmra.mxu0 %v1113
      %v1197 = vpop.f32.mrf.mxu0
      %1198 = vdwg.mxu0
      %s1199 = sadd.s32 192, 48
      %s1200 = scalar_lea.vmem %s198, %s1199
      %v1201 = vld [vmem:[%s1200] sm:$0xff]
      %v1202 = vld [vmem:[%s1200 + $0x8] sm:$0xff]
      %v1203 = vld [vmem:[%s1200 + $0x10] sm:$0xff]
      %v1204 = vld [vmem:[%s1200 + $0x18] sm:$0xff]
      %v1205 = vld [vmem:[%s1200 + $0x20] sm:$0xff]
      %v1206 = vld [vmem:[%s1200 + $0x28] sm:$0xff]
      %v1207 = vld [vmem:[%s1200 + $0x30] sm:$0xff]
      %v1208 = vld [vmem:[%s1200 + $0x38] sm:$0xff]
      %v1209 = vld [vmem:[%s1200 + $0x40] sm:$0xff]
      %v1210 = vld [vmem:[%s1200 + $0x48] sm:$0xff]
      %v1211 = vld [vmem:[%s1200 + $0x50] sm:$0xff]
      %v1212 = vld [vmem:[%s1200 + $0x58] sm:$0xff]
      %v1213 = vld [vmem:[%s1200 + $0x60] sm:$0xff]
      %v1214 = vld [vmem:[%s1200 + $0x68] sm:$0xff]
      %v1215 = vld [vmem:[%s1200 + $0x70] sm:$0xff]
      %v1216 = vld [vmem:[%s1200 + $0x78] sm:$0xff]
      %v1217 = vld [vmem:[%s1200 + $0x80] sm:$0xff]
      %v1218 = vld [vmem:[%s1200 + $0x88] sm:$0xff]
      %v1219 = vld [vmem:[%s1200 + $0x90] sm:$0xff]
      %v1220 = vld [vmem:[%s1200 + $0x98] sm:$0xff]
      %v1221 = vld [vmem:[%s1200 + $0xa0] sm:$0xff]
      %v1222 = vld [vmem:[%s1200 + $0xa8] sm:$0xff]
      %v1223 = vld [vmem:[%s1200 + $0xb0] sm:$0xff]
      %v1224 = vld [vmem:[%s1200 + $0xb8] sm:$0xff]
      %v1225 = vld [vmem:[%s606] sm:$0xff]
      %v1226 = vld [vmem:[%s606 + $0x8] sm:$0xf]
      %v1228 = vsel %vm266, %v1201, 0
      %v1231 = vsel %vm266, %v1202, 0
      %v1234 = vsel %vm266, %v1203, 0
      %v1237 = vsel %vm266, %v1204, 0
      %v1240 = vsel %vm266, %v1205, 0
      %v1243 = vsel %vm266, %v1206, 0
      %v1246 = vsel %vm266, %v1207, 0
      %v1249 = vsel %vm266, %v1208, 0
      %v1252 = vsel %vm266, %v1209, 0
      %v1255 = vsel %vm266, %v1210, 0
      %v1258 = vsel %vm266, %v1211, 0
      %v1261 = vsel %vm266, %v1212, 0
      %v1264 = vsel %vm266, %v1213, 0
      %v1267 = vsel %vm266, %v1214, 0
      %v1270 = vsel %vm266, %v1215, 0
      %v1273 = vsel %vm266, %v1216, 0
      %v1276 = vsel %vm266, %v1217, 0
      %v1279 = vsel %vm266, %v1218, 0
      %v1282 = vsel %vm266, %v1219, 0
      %v1285 = vsel %vm266, %v1220, 0
      %v1288 = vsel %vm266, %v1221, 0
      %v1291 = vsel %vm266, %v1222, 0
      %v1294 = vsel %vm266, %v1223, 0
      %v1297 = vsel %vm266, %v1224, 0
      %v1300 = vsel %vm339, %v1226, 0
      %1302 = vmatpush.msra.mxu0 0.0
      %1303 = vmatpush.msra.mxu0 0.0
      %1304 = vmatpush.msra.mxu0 0.0
      %1305 = vmatpush.msra.mxu0 0.0
      %1306 = vmatpush.msra.mxu0 0.0
      %1307 = vmatpush.msra.mxu0 0.0
      %1308 = vmatpush.msra.mxu0 0.0
      %1309 = vmatpush.msra.mxu0 0.0
      %1310 = vmatpush.msra.mxu0 0.0
      %1311 = vmatpush.msra.mxu0 0.0
      %1312 = vmatpush.msra.mxu0 0.0
      %1313 = vmatpush.msra.mxu0 0.0
      %1314 = vmatpush.msra.mxu0 0.0
      %1315 = vmatpush.msra.mxu0 0.0
      %1316 = vmatpush.msra.mxu0 %v1300
      %1317 = vmatpush.msra.mxu0 %v1225
      %1318 = vmatmul.f32.gmra.mxu0 %v1228
      %v1319 = vpop.f32.mrf.mxu0
      %v1320 = vadd.f32 0.0, %v1319
      %1321 = vmatmul.f32.gmra.mxu0 %v1231
      %v1322 = vpop.f32.mrf.mxu0
      %v1323 = vadd.f32 0.0, %v1322
      %1324 = vmatmul.f32.gmra.mxu0 %v1234
      %v1325 = vpop.f32.mrf.mxu0
      %1326 = vmatmul.f32.gmra.mxu0 %v1237
      %v1327 = vpop.f32.mrf.mxu0
      %v1328 = vadd.f32 0.0, %v1327
      %1329 = vmatmul.f32.gmra.mxu0 %v1240
      %v1330 = vpop.f32.mrf.mxu0
      %v1331 = vadd.f32 0.0, %v1330
      %1332 = vmatmul.f32.gmra.mxu0 %v1243
      %v1333 = vpop.f32.mrf.mxu0
      %1334 = vmatmul.f32.gmra.mxu0 %v1246
      %v1335 = vpop.f32.mrf.mxu0
      %v1336 = vadd.f32 0.0, %v1335
      %1337 = vmatmul.f32.gmra.mxu0 %v1249
      %v1338 = vpop.f32.mrf.mxu0
      %v1339 = vadd.f32 0.0, %v1338
      %1340 = vmatmul.f32.gmra.mxu0 %v1252
      %v1341 = vpop.f32.mrf.mxu0
      %1342 = vmatmul.f32.gmra.mxu0 %v1255
      %v1343 = vpop.f32.mrf.mxu0
      %v1344 = vadd.f32 0.0, %v1343
      %1345 = vmatmul.f32.gmra.mxu0 %v1258
      %v1346 = vpop.f32.mrf.mxu0
      %v1347 = vadd.f32 0.0, %v1346
      %1348 = vmatmul.f32.gmra.mxu0 %v1261
      %v1349 = vpop.f32.mrf.mxu0
      %1350 = vmatmul.f32.gmra.mxu0 %v1264
      %v1351 = vpop.f32.mrf.mxu0
      %v1352 = vadd.f32 0.0, %v1351
      %1353 = vmatmul.f32.gmra.mxu0 %v1267
      %v1354 = vpop.f32.mrf.mxu0
      %v1355 = vadd.f32 0.0, %v1354
      %1356 = vmatmul.f32.gmra.mxu0 %v1270
      %v1357 = vpop.f32.mrf.mxu0
      %1358 = vmatmul.f32.gmra.mxu0 %v1273
      %v1359 = vpop.f32.mrf.mxu0
      %v1360 = vadd.f32 0.0, %v1359
      %1361 = vmatmul.f32.gmra.mxu0 %v1276
      %v1362 = vpop.f32.mrf.mxu0
      %v1363 = vadd.f32 0.0, %v1362
      %1364 = vmatmul.f32.gmra.mxu0 %v1279
      %v1365 = vpop.f32.mrf.mxu0
      %1366 = vmatmul.f32.gmra.mxu0 %v1282
      %v1367 = vpop.f32.mrf.mxu0
      %v1368 = vadd.f32 0.0, %v1367
      %1369 = vmatmul.f32.gmra.mxu0 %v1285
      %v1370 = vpop.f32.mrf.mxu0
      %v1371 = vadd.f32 0.0, %v1370
      %1372 = vmatmul.f32.gmra.mxu0 %v1288
      %v1373 = vpop.f32.mrf.mxu0
      %1374 = vmatmul.f32.gmra.mxu0 %v1291
      %v1375 = vpop.f32.mrf.mxu0
      %v1376 = vadd.f32 0.0, %v1375
      %1377 = vmatmul.f32.gmra.mxu0 %v1294
      %v1378 = vpop.f32.mrf.mxu0
      %v1379 = vadd.f32 0.0, %v1378
      %1380 = vmatmul.f32.gmra.mxu0 %v1297
      %v1381 = vpop.f32.mrf.mxu0
      %1382 = vdwg.mxu0
      %v1383 = vadd.f32 %v1136, %v1320
      %v1384 = vadd.f32 %v1139, %v1323
      %v1385 = vadd.f32 %v1144, %v1328
      %v1386 = vadd.f32 %v1147, %v1331
      %v1387 = vadd.f32 %v1152, %v1336
      %v1388 = vadd.f32 %v1155, %v1339
      %v1389 = vadd.f32 %v1160, %v1344
      %v1390 = vadd.f32 %v1163, %v1347
      %v1391 = vadd.f32 %v1168, %v1352
      %v1392 = vadd.f32 %v1171, %v1355
      %v1393 = vadd.f32 %v1176, %v1360
      %v1394 = vadd.f32 %v1179, %v1363
      %v1395 = vadd.f32 %v1184, %v1368
      %v1396 = vadd.f32 %v1187, %v1371
      %v1397 = vadd.f32 %v1192, %v1376
      %v1398 = vadd.f32 %v1195, %v1379
      %v1399 = vadd.f32 %v1383, %v782
      %v1400 = vadd.f32 %v1384, %v782
      %v1401 = vadd.f32 %v1385, %v782
      %v1402 = vadd.f32 %v1386, %v782
      %v1403 = vadd.f32 %v1387, %v782
      %v1404 = vadd.f32 %v1388, %v782
      %v1405 = vadd.f32 %v1389, %v782
      %v1406 = vadd.f32 %v1390, %v782
      %v1407 = vadd.f32 %v1391, %v782
      %v1408 = vadd.f32 %v1392, %v782
      %v1409 = vadd.f32 %v1393, %v782
      %v1410 = vadd.f32 %v1394, %v782
      %v1411 = vadd.f32 %v1395, %v782
      %v1412 = vadd.f32 %v1396, %v782
      %v1413 = vadd.f32 %v1397, %v782
      %v1414 = vadd.f32 %v1398, %v782
      %v1415 = vmax.f32 %v1399, 0.0
      %v1416 = vmax.f32 %v1400, 0.0
      %v1417 = vmax.f32 %v1401, 0.0
      %v1418 = vmax.f32 %v1402, 0.0
      %v1419 = vmax.f32 %v1403, 0.0
      %v1420 = vmax.f32 %v1404, 0.0
      %v1421 = vmax.f32 %v1405, 0.0
      %v1422 = vmax.f32 %v1406, 0.0
      %v1423 = vmax.f32 %v1407, 0.0
      %v1424 = vmax.f32 %v1408, 0.0
      %v1425 = vmax.f32 %v1409, 0.0
      %v1426 = vmax.f32 %v1410, 0.0
      %v1427 = vmax.f32 %v1411, 0.0
      %v1428 = vmax.f32 %v1412, 0.0
      %v1429 = vmax.f32 %v1413, 0.0
      %v1430 = vmax.f32 %v1414, 0.0
      %s1431 = scalar_lea.vmem %s208, 128
      %1432 = vst [vmem:[%s1431] sm:$0xff] %v1415
      %1433 = vst [vmem:[%s1431 + $0x8] sm:$0xff] %v1416
      %1434 = vst [vmem:[%s1431 + $0x10] sm:$0xff] %v1417
      %1435 = vst [vmem:[%s1431 + $0x18] sm:$0xff] %v1418
      %1436 = vst [vmem:[%s1431 + $0x20] sm:$0xff] %v1419
      %1437 = vst [vmem:[%s1431 + $0x28] sm:$0xff] %v1420
      %1438 = vst [vmem:[%s1431 + $0x30] sm:$0xff] %v1421
      %1439 = vst [vmem:[%s1431 + $0x38] sm:$0xff] %v1422
      %1440 = vst [vmem:[%s1431 + $0x40] sm:$0xff] %v1423
      %1441 = vst [vmem:[%s1431 + $0x48] sm:$0xff] %v1424
      %1442 = vst [vmem:[%s1431 + $0x50] sm:$0xff] %v1425
      %1443 = vst [vmem:[%s1431 + $0x58] sm:$0xff] %v1426
      %1444 = vst [vmem:[%s1431 + $0x60] sm:$0xff] %v1427
      %1445 = vst [vmem:[%s1431 + $0x68] sm:$0xff] %v1428
      %1446 = vst [vmem:[%s1431 + $0x70] sm:$0xff] %v1429
      %1447 = vst [vmem:[%s1431 + $0x78] sm:$0xff] %v1430
      %s1448 = smul.u32 16, %s19
      %p1449 = scmp.lt.s32.totalorder %s18, 1
      %s1450 = scalar_select %p1449, %s18, 1
      %p1451 = scmp.lt.s32.totalorder %s1448, 15
      %s1452 = scalar_select %p1451, %s1448, 15
      %s1453 = smul.addr %s1452, 2
      %s1454 = smul.addr %s1450, 32
      %s1455 = sadd.s32 %s1453, %s1454
      %s1456 = smul.addr %s1455, 8
      %s1457 = scalar_lea.vmem %s3, %s1456
      // Predicated region
      $region33: #{conv_block_forward.1} parent=31 // pred_check
        %p1458 = pneg %p116
      $region34: #{conv_block_forward.1} parent=31 // pred_check_branch
        %1460 = sbr.rel (%p1458) target = $region36
      $region35: #{conv_block_forward.1} parent=31 // pred_region
        %s1461 = smul.u32 16, %s19
      $region36: #{conv_block_forward.1} parent=31 // pred_fallthru
        _
    $region32: #{conv_block_forward.1} parent=5 // pred_fallthru
      _
    %p1462 = scmp.le.s32.totalorder 2, %s9
    // Predicated region
    $region37: #{conv_block_forward.1} parent=5 // pred_check
      %p1463 = pneg %p1462
    $region38: #{conv_block_forward.1} parent=5 // pred_check_branch
      %1465 = sbr.rel (%p1463) target = $region40
    $region39: #{conv_block_forward.1} parent=5 // pred_region
      %s1466 = ssub.s32 %s9, 2
      // Predicated region
      $region41: #{conv_block_forward.1} parent=39 // pred_check
        %p1467 = pneg %p122
      $region42: #{conv_block_forward.1} parent=39 // pred_check_branch
        %1469 = sbr.rel (%p1467) target = $region44
      $region43: #{conv_block_forward.1} parent=39 // pred_region
        %s1470 = smul.u32 16, %s21
        %p1471 = scmp.lt.s32.totalorder %s20, 1
        %s1472 = scalar_select %p1471, %s20, 1
        %p1473 = scmp.lt.s32.totalorder %s1470, 15
        %s1474 = scalar_select %p1473, %s1470, 15
        %s1475 = smul.addr %s1474, 2
        %s1476 = smul.addr %s1472, 32
        %s1477 = sadd.s32 %s1475, %s1476
        %s1478 = smul.addr %s1477, 8
        %s1479 = scalar_lea.vmem %s3, %s1478
      $region44: #{conv_block_forward.1} parent=39 // pred_fallthru
        _
    $region40: #{conv_block_forward.1} parent=5 // pred_fallthru
      _
  $region6: #{conv_block_forward.1} parent=0 // loop_footer
    %s13 = sadd.s32 1, %s9
  $region7: #{conv_block_forward.1} parent=0 // loop_footer_branch
    %8 = sbr.rel target = $region3
  $region8: #{conv_block_forward.1} parent=0 // loop_exit
    _

</llo_original>
